<compile_context>
chip_gen: v5e
topology: v5e:2x2
jax: 0.10.0
libtpu: 0.0.40
codegen_flags: <defaults>
</compile_context>

<pallas_src>
import math

import jax
import jax.numpy as jnp
from jax.experimental import pallas as pl
from jax.experimental.pallas import tpu as pltpu


def _cdiv(a, b):
    return -(-a // b)


def _round_up(a, m):
    return _cdiv(a, m) * m


def _make_edge_loss_kernel(masked):
    """Kernel factory: masked / unmasked variants share the hot path."""

    def kernel(*refs):
        if masked:
            x_ref, v_ref, out_ref = refs
        else:
            x_ref, out_ref = refs

        t = pl.program_id(1)  # reduction step within this group

        @pl.when(t == 0)
        def _init():
            out_ref[...] = jnp.zeros_like(out_ref)

        # Load + cast each of the 18 (rows, 128) planes exactly once; reuse.
        # Flat plane index = (slot * 2 + src) * 3 + xyz,
        # slot in {v0,v1,v2}, src in {pred, gt}, xyz in {x,y,z}.
        def plane(slot, src, xyz):
            return x_ref[(slot * 2 + src) * 3 + xyz, :, :].astype(jnp.float32)

        p = [[[plane(s, c, k) for k in range(3)]
              for c in range(2)]
             for s in range(3)]

        def edge_diff(sa, sb):
            def elen(c):
                dx = p[sa][c][0] - p[sb][c][0]
                dy = p[sa][c][1] - p[sb][c][1]
                dz = p[sa][c][2] - p[sb][c][2]
                return jnp.sqrt(dx * dx + dy * dy + dz * dz)
            return jnp.abs(elen(0) - elen(1))  # |pred_len - gt_len|, (rows,128)

        d1 = edge_diff(0, 1)
        d2 = edge_diff(0, 2)
        d3 = edge_diff(1, 2)

        if masked:
            contrib = (d1 * v_ref[0, :, :].astype(jnp.float32)
                       + d2 * v_ref[1, :, :].astype(jnp.float32)
                       + d3 * v_ref[2, :, :].astype(jnp.float32))
        else:
            contrib = d1 + d2 + d3

        # Elementwise accumulation into the resident f32 output block; the
        # tiny final reduction + mean happens in the wrapper.
        out_ref[...] += contrib

    return kernel


def edge_length_loss(coord_out, coord_gt, face, is_valid=None,
                     *, compute_dtype=jnp.bfloat16):
    """Pallas implementation of EdgeLengthLoss.forward. Returns a scalar.

    compute_dtype controls the precision of the streamed gathered-vertex
    planes (accumulation is always f32). bfloat16 (default) halves HBM
    traffic; pass jnp.float32 for bit-faithful results.
    """
    coord_out = jnp.asarray(coord_out)
    coord_gt = jnp.asarray(coord_gt)
    face = jnp.asarray(face, jnp.int32)

    b = coord_out.shape[0]
    f = face.shape[0]
    masked = is_valid is not None
    csize = jnp.dtype(compute_dtype).itemsize
    nplanes = 18 + (3 if masked else 0)

    # ---- tile sizing: (B, F) flattened into a dense (rows, 128) layout ------
    # rows-per-tile must be a multiple of 8 (sublane) and of B/gcd(B,128) so a
    # tile always covers a whole number of faces.
    rpg = b // math.gcd(b, 128)                       # rows per face granule
    rows_unit = 8 * rpg // math.gcd(rpg, 8)           # lcm(rpg, 8)

    target_step_bytes = 6 * 1024 * 1024               # double-buffered fits v7x
    rows_needed = _cdiv(b * f, 128)
    r_target = max(rows_unit, target_step_bytes // (nplanes * 128 * csize))
    r = min(r_target, rows_needed)
    r = _round_up(max(r, 1), rows_unit)

    faces_per_tile = (r * 128) // b                    # exact by construction
    n_tiles = _cdiv(f, faces_per_tile)
    n_groups = 2 if n_tiles >= 2 else 1                # megacore split on v7x
    tiles_per_group = _cdiv(n_tiles, n_groups)
    f_pad = n_groups * tiles_per_group * faces_per_tile
    nr_total = n_groups * tiles_per_group * r          # == b * f_pad // 128

    # ---- pad the tiny face table with degenerate faces (contribute 0) -------
    if f_pad > f:
        face = jnp.concatenate(
            [face, jnp.zeros((f_pad - f, 3), jnp.int32)], axis=0)

    # ---- gather directly in kernel layout (transpose the SMALL array) -------
    # TODO(synk): fusing the gather into the kernel (coords VMEM-resident +
    # face indices via scalar prefetch) would cut HBM traffic a further ~6x.
    ct = jnp.transpose(jnp.stack([coord_out, coord_gt], axis=0),
                       (0, 3, 1, 2))                   # (2 src, 3 xyz, B, V)
    planes = [jnp.take(ct, face[:, s], axis=3).astype(compute_dtype)
              for s in range(3)]                       # each (2, 3, B, F_pad)
    x = jnp.stack(planes, axis=0)                      # (3 slot, 2, 3, B, F_pad)
    x = x.reshape(18, nr_total, 128)                   # flat (B*F) lane-dense

    in_arrays = [x]
    in_specs = [pl.BlockSpec(
        (18, r, 128),
        lambda gi, ti: (0, gi * tiles_per_group + ti, 0))]

    if masked:
        # torch: loss of shape (B, 3F, 1) *= is_valid (broadcast), then mean.
        # TODO(synk): only is_valid shapes broadcastable to (B, 3F, 1) are
        # supported (the same shapes torch's in-place broadcast accepts).
        v = jnp.broadcast_to(jnp.asarray(is_valid), (b, 3 * f, 1))
        v = v.reshape(b, 3, f).astype(compute_dtype)
        v = jnp.transpose(v, (1, 0, 2))                # (3 edge, B, F)
        if f_pad > f:
            v = jnp.pad(v, ((0, 0), (0, 0), (0, f_pad - f)))
        v = v.reshape(3, nr_total, 128)
        in_arrays.append(v)
        in_specs.append(pl.BlockSpec(
            (3, r, 128),
            lambda gi, ti: (0, gi * tiles_per_group + ti, 0)))

    partials = pl.pallas_call(
        _make_edge_loss_kernel(masked),
        out_shape=jax.ShapeDtypeStruct((n_groups, r, 128), jnp.float32),
        grid_spec=pltpu.PrefetchScalarGridSpec(
            num_scalar_prefetch=0,
            grid=(n_groups, tiles_per_group),
            in_specs=in_specs,
            out_specs=pl.BlockSpec((None, r, 128), lambda gi, ti: (gi, 0, 0)),
        ),
        compiler_params=pltpu.CompilerParams(
            dimension_semantics=("parallel", "arbitrary"),
            vmem_limit_bytes=32 * 1024 * 1024),
    )(*in_arrays)

    # torch.mean over the (B, 3F, 1) loss tensor; padded lanes contribute 0.
    # TODO(synk): padded lanes hit sqrt(0); fine for the forward value, but a
    # custom_vjp / epsilon guard would be needed if gradients are required.
    return jnp.sum(partials) / jnp.float32(b * 3 * f)


def _reference(coord_out, coord_gt, face, is_valid=None):
    """Pure-JAX reference mirroring the PyTorch forward exactly."""
    def d(c, i, j):
        return jnp.sqrt(jnp.sum(
            (c[:, face[:, i], :] - c[:, face[:, j], :]) ** 2, 2, keepdims=True))
    diff1 = jnp.abs(d(coord_out, 0, 1) - d(coord_gt, 0, 1))
    diff2 = jnp.abs(d(coord_out, 0, 2) - d(coord_gt, 0, 2))
    diff3 = jnp.abs(d(coord_out, 1, 2) - d(coord_gt, 1, 2))
    loss = jnp.concatenate((diff1, diff2, diff3), 1)
    if is_valid is not None:
        loss = loss * is_valid
    return jnp.mean(loss)


if __name__ == "__main__":
    key = jax.random.PRNGKey(0)
    k1, k2, k3 = jax.random.split(key, 3)

    B, V, F_TRI = 2, 16, 8  # batch, #vertices, #faces

    coord_out = jax.random.normal(k1, (B, V, 3), dtype=jnp.float32)
    coord_gt = jax.random.normal(k2, (B, V, 3), dtype=jnp.float32)

    # Deterministic synthetic triangle connectivity (the module's `face` param).
    face = jnp.stack([
        jnp.arange(F_TRI, dtype=jnp.int32) % V,
        (jnp.arange(F_TRI, dtype=jnp.int32) + 3) % V,
        (jnp.arange(F_TRI, dtype=jnp.int32) + 7) % V,
    ], axis=1)  # (F, 3)

    is_valid = (jax.random.uniform(k3, (B, 3 * F_TRI, 1)) > 0.3).astype(jnp.float32)

    ref = _reference(coord_out, coord_gt, face)
    ref_m = _reference(coord_out, coord_gt, face, is_valid)

    # f32 streaming: bit-faithful to the PyTorch forward.
    loss = edge_length_loss(coord_out, coord_gt, face,
                            compute_dtype=jnp.float32)
    jax.block_until_ready(loss)
    assert jnp.allclose(loss, ref, rtol=1e-5, atol=1e-6), (loss, ref)

    loss_m = edge_length_loss(coord_out, coord_gt, face, is_valid,
                              compute_dtype=jnp.float32)
    jax.block_until_ready(loss_m)
    assert jnp.allclose(loss_m, ref_m, rtol=1e-5, atol=1e-6), (loss_m, ref_m)

    # Default bf16 streaming: looser tolerance (coordinate quantization).
    loss_bf = edge_length_loss(coord_out, coord_gt, face)
    loss_m_bf = edge_length_loss(coord_out, coord_gt, face, is_valid)
    jax.block_until_ready((loss_bf, loss_m_bf))
    assert jnp.allclose(loss_bf, ref, rtol=5e-2, atol=2e-2), (loss_bf, ref)
    assert jnp.allclose(loss_m_bf, ref_m, rtol=5e-2, atol=2e-2), (loss_m_bf, ref_m)

    print("KERNEL_OK")
</pallas_src>

<mosaic_0001>
module attributes {stable_mosaic.version = 11 : i64} {
  func.func @kernel(%arg0: i32, %arg1: i32, %arg2: memref<18x8x128xf32, #tpu.memory_space<vmem>>, %arg3: memref<1x8x128xf32, #tpu.memory_space<vmem>>) attributes {dimension_semantics = [#tpu.dimension_semantics<parallel>, #tpu.dimension_semantics<arbitrary>], iteration_bounds = array<i64: 1, 1>, scalar_prefetch = 0 : i64, scratch_operands = 0 : i64, tpu.core_type = #tpu.core_type<tc>, window_params = [{transform_indices = @transform_0, window_bounds = array<i64: 18, 8, 128>}, {transform_indices = @transform_1, window_bounds = array<i64: 1, 8, 128>}]} {
    %c0_i32 = arith.constant 0 : i32
    %0 = arith.cmpi eq, %arg1, %c0_i32 : i32
    %1 = arith.extui %0 : i1 to i32
    %c0_i32_0 = arith.constant 0 : i32
    %2 = arith.cmpi ne, %1, %c0_i32_0 : i32
    scf.if %2 {
      %cst = arith.constant 0.000000e+00 : f32
      %107 = vector.broadcast %cst : f32 to vector<8x128xf32>
      %c0_43 = arith.constant 0 : index
      %c0_44 = arith.constant 0 : index
      %c0_45 = arith.constant 0 : index
      %108 = vector.load %arg3[%c0_43, %c0_44, %c0_45] : memref<1x8x128xf32, #tpu.memory_space<vmem>>, vector<1x8x128xf32>
      %109 = vector.shape_cast %108 : vector<1x8x128xf32> to vector<8x128xf32>
      %110 = vector.shape_cast %107 : vector<8x128xf32> to vector<1x8x128xf32>
      tpu.vector_store %arg3[%c0_43, %c0_44, %c0_45], %110 {strides = array<i32>} : memref<1x8x128xf32, #tpu.memory_space<vmem>>, vector<1x8x128xf32>,
    } else {
    }
    %c0 = arith.constant 0 : index
    %c0_1 = arith.constant 0 : index
    %c0_2 = arith.constant 0 : index
    %3 = vector.load %arg2[%c0, %c0_1, %c0_2] : memref<18x8x128xf32, #tpu.memory_space<vmem>>, vector<1x8x128xf32>
    %4 = vector.shape_cast %3 : vector<1x8x128xf32> to vector<8x128xf32>
    %c1 = arith.constant 1 : index
    %c0_3 = arith.constant 0 : index
    %c0_4 = arith.constant 0 : index
    %5 = vector.load %arg2[%c1, %c0_3, %c0_4] : memref<18x8x128xf32, #tpu.memory_space<vmem>>, vector<1x8x128xf32>
    %6 = vector.shape_cast %5 : vector<1x8x128xf32> to vector<8x128xf32>
    %c2 = arith.constant 2 : index
    %c0_5 = arith.constant 0 : index
    %c0_6 = arith.constant 0 : index
    %7 = vector.load %arg2[%c2, %c0_5, %c0_6] : memref<18x8x128xf32, #tpu.memory_space<vmem>>, vector<1x8x128xf32>
    %8 = vector.shape_cast %7 : vector<1x8x128xf32> to vector<8x128xf32>
    %c3 = arith.constant 3 : index
    %c0_7 = arith.constant 0 : index
    %c0_8 = arith.constant 0 : index
    %9 = vector.load %arg2[%c3, %c0_7, %c0_8] : memref<18x8x128xf32, #tpu.memory_space<vmem>>, vector<1x8x128xf32>
    %10 = vector.shape_cast %9 : vector<1x8x128xf32> to vector<8x128xf32>
    %c4 = arith.constant 4 : index
    %c0_9 = arith.constant 0 : index
    %c0_10 = arith.constant 0 : index
    %11 = vector.load %arg2[%c4, %c0_9, %c0_10] : memref<18x8x128xf32, #tpu.memory_space<vmem>>, vector<1x8x128xf32>
    %12 = vector.shape_cast %11 : vector<1x8x128xf32> to vector<8x128xf32>
    %c5 = arith.constant 5 : index
    %c0_11 = arith.constant 0 : index
    %c0_12 = arith.constant 0 : index
    %13 = vector.load %arg2[%c5, %c0_11, %c0_12] : memref<18x8x128xf32, #tpu.memory_space<vmem>>, vector<1x8x128xf32>
    %14 = vector.shape_cast %13 : vector<1x8x128xf32> to vector<8x128xf32>
    %c6 = arith.constant 6 : index
    %c0_13 = arith.constant 0 : index
    %c0_14 = arith.constant 0 : index
    %15 = vector.load %arg2[%c6, %c0_13, %c0_14] : memref<18x8x128xf32, #tpu.memory_space<vmem>>, vector<1x8x128xf32>
    %16 = vector.shape_cast %15 : vector<1x8x128xf32> to vector<8x128xf32>
    %c7 = arith.constant 7 : index
    %c0_15 = arith.constant 0 : index
    %c0_16 = arith.constant 0 : index
    %17 = vector.load %arg2[%c7, %c0_15, %c0_16] : memref<18x8x128xf32, #tpu.memory_space<vmem>>, vector<1x8x128xf32>
    %18 = vector.shape_cast %17 : vector<1x8x128xf32> to vector<8x128xf32>
    %c8 = arith.constant 8 : index
    %c0_17 = arith.constant 0 : index
    %c0_18 = arith.constant 0 : index
    %19 = vector.load %arg2[%c8, %c0_17, %c0_18] : memref<18x8x128xf32, #tpu.memory_space<vmem>>, vector<1x8x128xf32>
    %20 = vector.shape_cast %19 : vector<1x8x128xf32> to vector<8x128xf32>
    %c9 = arith.constant 9 : index
    %c0_19 = arith.constant 0 : index
    %c0_20 = arith.constant 0 : index
    %21 = vector.load %arg2[%c9, %c0_19, %c0_20] : memref<18x8x128xf32, #tpu.memory_space<vmem>>, vector<1x8x128xf32>
    %22 = vector.shape_cast %21 : vector<1x8x128xf32> to vector<8x128xf32>
    %c10 = arith.constant 10 : index
    %c0_21 = arith.constant 0 : index
    %c0_22 = arith.constant 0 : index
    %23 = vector.load %arg2[%c10, %c0_21, %c0_22] : memref<18x8x128xf32, #tpu.memory_space<vmem>>, vector<1x8x128xf32>
    %24 = vector.shape_cast %23 : vector<1x8x128xf32> to vector<8x128xf32>
    %c11 = arith.constant 11 : index
    %c0_23 = arith.constant 0 : index
    %c0_24 = arith.constant 0 : index
    %25 = vector.load %arg2[%c11, %c0_23, %c0_24] : memref<18x8x128xf32, #tpu.memory_space<vmem>>, vector<1x8x128xf32>
    %26 = vector.shape_cast %25 : vector<1x8x128xf32> to vector<8x128xf32>
    %c12 = arith.constant 12 : index
    %c0_25 = arith.constant 0 : index
    %c0_26 = arith.constant 0 : index
    %27 = vector.load %arg2[%c12, %c0_25, %c0_26] : memref<18x8x128xf32, #tpu.memory_space<vmem>>, vector<1x8x128xf32>
    %28 = vector.shape_cast %27 : vector<1x8x128xf32> to vector<8x128xf32>
    %c13 = arith.constant 13 : index
    %c0_27 = arith.constant 0 : index
    %c0_28 = arith.constant 0 : index
    %29 = vector.load %arg2[%c13, %c0_27, %c0_28] : memref<18x8x128xf32, #tpu.memory_space<vmem>>, vector<1x8x128xf32>
    %30 = vector.shape_cast %29 : vector<1x8x128xf32> to vector<8x128xf32>
    %c14 = arith.constant 14 : index
    %c0_29 = arith.constant 0 : index
    %c0_30 = arith.constant 0 : index
    %31 = vector.load %arg2[%c14, %c0_29, %c0_30] : memref<18x8x128xf32, #tpu.memory_space<vmem>>, vector<1x8x128xf32>
    %32 = vector.shape_cast %31 : vector<1x8x128xf32> to vector<8x128xf32>
    %c15 = arith.constant 15 : index
    %c0_31 = arith.constant 0 : index
    %c0_32 = arith.constant 0 : index
    %33 = vector.load %arg2[%c15, %c0_31, %c0_32] : memref<18x8x128xf32, #tpu.memory_space<vmem>>, vector<1x8x128xf32>
    %34 = vector.shape_cast %33 : vector<1x8x128xf32> to vector<8x128xf32>
    %c16 = arith.constant 16 : index
    %c0_33 = arith.constant 0 : index
    %c0_34 = arith.constant 0 : index
    %35 = vector.load %arg2[%c16, %c0_33, %c0_34] : memref<18x8x128xf32, #tpu.memory_space<vmem>>, vector<1x8x128xf32>
    %36 = vector.shape_cast %35 : vector<1x8x128xf32> to vector<8x128xf32>
    %c17 = arith.constant 17 : index
    %c0_35 = arith.constant 0 : index
    %c0_36 = arith.constant 0 : index
    %37 = vector.load %arg2[%c17, %c0_35, %c0_36] : memref<18x8x128xf32, #tpu.memory_space<vmem>>, vector<1x8x128xf32>
    %38 = vector.shape_cast %37 : vector<1x8x128xf32> to vector<8x128xf32>
    %39 = arith.subf %4, %16 : vector<8x128xf32>
    %40 = arith.subf %6, %18 : vector<8x128xf32>
    %41 = arith.subf %8, %20 : vector<8x128xf32>
    %42 = arith.mulf %39, %39 : vector<8x128xf32>
    %43 = arith.mulf %40, %40 : vector<8x128xf32>
    %44 = arith.addf %42, %43 : vector<8x128xf32>
    %45 = arith.mulf %41, %41 : vector<8x128xf32>
    %46 = arith.addf %44, %45 : vector<8x128xf32>
    %47 = math.sqrt %46 : vector<8x128xf32>
    %48 = arith.subf %10, %22 : vector<8x128xf32>
    %49 = arith.subf %12, %24 : vector<8x128xf32>
    %50 = arith.subf %14, %26 : vector<8x128xf32>
    %51 = arith.mulf %48, %48 : vector<8x128xf32>
    %52 = arith.mulf %49, %49 : vector<8x128xf32>
    %53 = arith.addf %51, %52 : vector<8x128xf32>
    %54 = arith.mulf %50, %50 : vector<8x128xf32>
    %55 = arith.addf %53, %54 : vector<8x128xf32>
    %56 = math.sqrt %55 : vector<8x128xf32>
    %57 = arith.subf %47, %56 : vector<8x128xf32>
    %58 = math.absf %57 : vector<8x128xf32>
    %59 = arith.subf %4, %28 : vector<8x128xf32>
    %60 = arith.subf %6, %30 : vector<8x128xf32>
    %61 = arith.subf %8, %32 : vector<8x128xf32>
    %62 = arith.mulf %59, %59 : vector<8x128xf32>
    %63 = arith.mulf %60, %60 : vector<8x128xf32>
    %64 = arith.addf %62, %63 : vector<8x128xf32>
    %65 = arith.mulf %61, %61 : vector<8x128xf32>
    %66 = arith.addf %64, %65 : vector<8x128xf32>
    %67 = math.sqrt %66 : vector<8x128xf32>
    %68 = arith.subf %10, %34 : vector<8x128xf32>
    %69 = arith.subf %12, %36 : vector<8x128xf32>
    %70 = arith.subf %14, %38 : vector<8x128xf32>
    %71 = arith.mulf %68, %68 : vector<8x128xf32>
    %72 = arith.mulf %69, %69 : vector<8x128xf32>
    %73 = arith.addf %71, %72 : vector<8x128xf32>
    %74 = arith.mulf %70, %70 : vector<8x128xf32>
    %75 = arith.addf %73, %74 : vector<8x128xf32>
    %76 = math.sqrt %75 : vector<8x128xf32>
    %77 = arith.subf %67, %76 : vector<8x128xf32>
    %78 = math.absf %77 : vector<8x128xf32>
    %79 = arith.subf %16, %28 : vector<8x128xf32>
    %80 = arith.subf %18, %30 : vector<8x128xf32>
    %81 = arith.subf %20, %32 : vector<8x128xf32>
    %82 = arith.mulf %79, %79 : vector<8x128xf32>
    %83 = arith.mulf %80, %80 : vector<8x128xf32>
    %84 = arith.addf %82, %83 : vector<8x128xf32>
    %85 = arith.mulf %81, %81 : vector<8x128xf32>
    %86 = arith.addf %84, %85 : vector<8x128xf32>
    %87 = math.sqrt %86 : vector<8x128xf32>
    %88 = arith.subf %22, %34 : vector<8x128xf32>
    %89 = arith.subf %24, %36 : vector<8x128xf32>
    %90 = arith.subf %26, %38 : vector<8x128xf32>
    %91 = arith.mulf %88, %88 : vector<8x128xf32>
    %92 = arith.mulf %89, %89 : vector<8x128xf32>
    %93 = arith.addf %91, %92 : vector<8x128xf32>
    %94 = arith.mulf %90, %90 : vector<8x128xf32>
    %95 = arith.addf %93, %94 : vector<8x128xf32>
    %96 = math.sqrt %95 : vector<8x128xf32>
    %97 = arith.subf %87, %96 : vector<8x128xf32>
    %98 = math.absf %97 : vector<8x128xf32>
    %99 = arith.addf %58, %78 : vector<8x128xf32>
    %100 = arith.addf %99, %98 : vector<8x128xf32>
    %c0_37 = arith.constant 0 : index
    %c0_38 = arith.constant 0 : index
    %c0_39 = arith.constant 0 : index
    %101 = vector.load %arg3[%c0_37, %c0_38, %c0_39] : memref<1x8x128xf32, #tpu.memory_space<vmem>>, vector<1x8x128xf32>
    %102 = vector.shape_cast %101 : vector<1x8x128xf32> to vector<8x128xf32>
    %103 = arith.addf %102, %100 : vector<8x128xf32>
    %c0_40 = arith.constant 0 : index
    %c0_41 = arith.constant 0 : index
    %c0_42 = arith.constant 0 : index
    %104 = vector.load %arg3[%c0_40, %c0_41, %c0_42] : memref<1x8x128xf32, #tpu.memory_space<vmem>>, vector<1x8x128xf32>
    %105 = vector.shape_cast %104 : vector<1x8x128xf32> to vector<8x128xf32>
    %106 = vector.shape_cast %103 : vector<8x128xf32> to vector<1x8x128xf32>
    tpu.vector_store %arg3[%c0_40, %c0_41, %c0_42], %106 {strides = array<i32>} : memref<1x8x128xf32, #tpu.memory_space<vmem>>, vector<1x8x128xf32>,
    return
  }
  func.func @transform_0(%arg0: i32, %arg1: i32) -> (i32, i32, i32) {
    %c1_i32 = arith.constant 1 : i32
    %0 = arith.muli %arg0, %c1_i32 : i32
    %1 = arith.addi %0, %arg1 : i32
    %c0_i32 = arith.constant 0 : i32
    %c0_i32_0 = arith.constant 0 : i32
    %c0_i32_1 = arith.constant 0 : i32
    return %c0_i32, %1, %c0_i32_0 : i32, i32, i32
  }
  func.func @transform_1(%arg0: i32, %arg1: i32) -> (i32, i32, i32) {
    %c0_i32 = arith.constant 0 : i32
    %c0_i32_0 = arith.constant 0 : i32
    %c0_i32_1 = arith.constant 0 : i32
    return %arg0, %c0_i32, %c0_i32_0 : i32, i32, i32
  }
}

</mosaic_0001>

<llo_original>
// kernel: tpu_custom_call.1
$region0: #{tpu_custom_call.1}
  #allocation0 [shape = 'u32[]', space=smem, size = 0x4, offset = 0x4, fixed_abs, tag = 'smem constant byte address 0x4 - core index']
  #allocation1 [shape = 'u32[72,128]{1,0:T(1,128)}', space=vmem, size = 0x9000, scoped, tag = 'internal scratch']
  %s0 = inlined_call_operand.hbm [shape: f32[18,8,128], index: 0, kind: input, shape index: {}]
  %s1 = inlined_call_operand.hbm [shape: f32[1,8,128], index: 1, kind: output, shape index: {}]
  %s2 = sld [smem:[#allocation0]]
  $region22: #{tpu_custom_call.1} parent=0
    _
  %s4 = ssub.s32 1, %s2
  %s5 = scalar_select 0, %s4, %s2
  $region1: #{tpu_custom_call.1} parent=0
    #allocation2 [shape = 'u8[73728]{0}', space=vmem, size = 0x12000, scoped, tag = 'input window, operand 0, single buffered']
    #allocation3 [shape = 's32[1]{0}', space=sflag, size = 0x4, scoped, tag = 'scoped memory for tpu_custom_call.1']
    #allocation4 [shape = 's32[1]{0}', space=sflag, size = 0x4, scoped, tag = 'scoped memory for tpu_custom_call.1']
    #allocation5 [shape = 'u8[4096]{0}', space=vmem, size = 0x1000, scoped, tag = 'output window, operand 0, single buffered']
    %6 = vsyncpa [#allocation3], 0
    %7 = vsyncpa [#allocation4], 0
    // Predicated region
    $region2: #{tpu_custom_call.1} parent=1 // pred_check
      _
    $region3: #{tpu_custom_call.1} parent=1 // pred_check_branch
      %9 = sbr.rel (0) target = $region5
    $region4: #{tpu_custom_call.1} parent=1 // pred_region
      %s10 = sadd.s32 0, 0
      %12 = vsyncadd [#allocation3], 0
      %s13 = smul.addr %s10, 8
      %s14 = scalar_lea.hbm %s0, %s13
      %s15 = sshll.u32 %s14, 4
      %s16 = int_to_ptr.hbm [resolvable:$true] %s15
      %s17 = sshll.u32 [#allocation2], 4
      %s18 = int_to_ptr.vmem [resolvable:$true] %s17
      %23 = dma.hbm_to_vmem [thread:$0]  %s16, 2304, %s18, [#allocation3], 128, 128, 8
    $region5: #{tpu_custom_call.1} parent=1 // pred_fallthru
      _
    // Predicated region
    $region6: #{tpu_custom_call.1} parent=1 // pred_check
      _
    $region7: #{tpu_custom_call.1} parent=1 // pred_check_branch
      %25 = sbr.rel (0) target = $region9
    $region8: #{tpu_custom_call.1} parent=1 // pred_region
      %27 = dma.done [#allocation3], 2304
    $region9: #{tpu_custom_call.1} parent=1 // pred_fallthru
      _
    %s28 = sadd.s32 0, 0
    %p29 = scmp.eq.s32.totalorder 0, 0
    // Predicated region
    $region10: #{tpu_custom_call.1} parent=1 // pred_check
      %p30 = pneg %p29
    $region11: #{tpu_custom_call.1} parent=1 // pred_check_branch
      %32 = sbr.rel (%p30) target = $region13
    $region12: #{tpu_custom_call.1} parent=1 // pred_region
      %33 = vst [vmem:[#allocation5] sm:$0xff] 0.0
    $region13: #{tpu_custom_call.1} parent=1 // pred_fallthru
      _
    %v34 = vld [vmem:[#allocation2] sm:$0xff]
    %s35 = scalar_lea.vmem [#allocation2], 8
    %v36 = vld [vmem:[%s35] sm:$0xff]
    %s37 = scalar_lea.vmem [#allocation2], 16
    %v38 = vld [vmem:[%s37] sm:$0xff]
    %s39 = scalar_lea.vmem [#allocation2], 24
    %v40 = vld [vmem:[%s39] sm:$0xff]
    %s41 = scalar_lea.vmem [#allocation2], 32
    %v42 = vld [vmem:[%s41] sm:$0xff]
    %s43 = scalar_lea.vmem [#allocation2], 40
    %v44 = vld [vmem:[%s43] sm:$0xff]
    %s45 = scalar_lea.vmem [#allocation2], 48
    %v46 = vld [vmem:[%s45] sm:$0xff]
    %s47 = scalar_lea.vmem [#allocation2], 56
    %v48 = vld [vmem:[%s47] sm:$0xff]
    %s49 = scalar_lea.vmem [#allocation2], 64
    %v50 = vld [vmem:[%s49] sm:$0xff]
    %s51 = scalar_lea.vmem [#allocation2], 72
    %v52 = vld [vmem:[%s51] sm:$0xff]
    %s53 = scalar_lea.vmem [#allocation2], 80
    %v54 = vld [vmem:[%s53] sm:$0xff]
    %s55 = scalar_lea.vmem [#allocation2], 88
    %v56 = vld [vmem:[%s55] sm:$0xff]
    %s57 = scalar_lea.vmem [#allocation2], 96
    %v58 = vld [vmem:[%s57] sm:$0xff]
    %s59 = scalar_lea.vmem [#allocation2], 104
    %v60 = vld [vmem:[%s59] sm:$0xff]
    %s61 = scalar_lea.vmem [#allocation2], 112
    %v62 = vld [vmem:[%s61] sm:$0xff]
    %s63 = scalar_lea.vmem [#allocation2], 120
    %v64 = vld [vmem:[%s63] sm:$0xff]
    %s65 = scalar_lea.vmem [#allocation2], 128
    %v66 = vld [vmem:[%s65] sm:$0xff]
    %s67 = scalar_lea.vmem [#allocation2], 136
    %v68 = vld [vmem:[%s67] sm:$0xff]
    %v69 = vsub.f32 %v34, %v46
    %v70 = vsub.f32 %v36, %v48
    %v71 = vsub.f32 %v38, %v50
    %v72 = vmul.f32 %v69, %v69
    %v73 = vmul.f32 %v70, %v70
    %v74 = vadd.f32 %v72, %v73
    %v75 = vmul.f32 %v71, %v71
    %v76 = vadd.f32 %v74, %v75
    %v77 = vrsqrt.pop %v76
    %v78 = vmul.f32 %v77, %v76
    %v79 = vmul.f32 %v78, %v77
    %v80 = vmul.f32 0.5, %v79
    %v81 = vsub.f32 1.5, %v80
    %v82 = vmul.f32 %v77, %v81
    %v83 = vmul.f32 %v76, %v82
    %vm84 = vcmp.eq.f32.partialorder %v76, inf
    %v85 = vsel %vm84, %v76, %v83
    %vm86 = vcmp.eq.f32.partialorder %v76, 0.0
    %v87 = vand.u32 %v76, 2147483648
    %v88 = vsel %vm86, %v87, %v85
    %v89 = vsub.f32 %v40, %v52
    %v90 = vsub.f32 %v42, %v54
    %v91 = vsub.f32 %v44, %v56
    %v92 = vmul.f32 %v89, %v89
    %v93 = vmul.f32 %v90, %v90
    %v94 = vadd.f32 %v92, %v93
    %v95 = vmul.f32 %v91, %v91
    %v96 = vadd.f32 %v94, %v95
    %v97 = vrsqrt.pop %v96
    %v98 = vmul.f32 %v97, %v96
    %v99 = vmul.f32 %v98, %v97
    %v100 = vmul.f32 0.5, %v99
    %v101 = vsub.f32 1.5, %v100
    %v102 = vmul.f32 %v97, %v101
    %v103 = vmul.f32 %v96, %v102
    %vm104 = vcmp.eq.f32.partialorder %v96, inf
    %v105 = vsel %vm104, %v96, %v103
    %vm106 = vcmp.eq.f32.partialorder %v96, 0.0
    %v107 = vand.u32 %v96, 2147483648
    %v108 = vsel %vm106, %v107, %v105
    %v109 = vsub.f32 %v88, %v108
    %v110 = vand.u32 2147483647, %v109
    %v111 = vsub.f32 %v34, %v58
    %v112 = vsub.f32 %v36, %v60
    %v113 = vsub.f32 %v38, %v62
    %v114 = vmul.f32 %v111, %v111
    %v115 = vmul.f32 %v112, %v112
    %v116 = vadd.f32 %v114, %v115
    %v117 = vmul.f32 %v113, %v113
    %v118 = vadd.f32 %v116, %v117
    %v119 = vrsqrt.pop %v118
    %v120 = vmul.f32 %v119, %v118
    %v121 = vmul.f32 %v120, %v119
    %v122 = vmul.f32 0.5, %v121
    %v123 = vsub.f32 1.5, %v122
    %v124 = vmul.f32 %v119, %v123
    %v125 = vmul.f32 %v118, %v124
    %vm126 = vcmp.eq.f32.partialorder %v118, inf
    %v127 = vsel %vm126, %v118, %v125
    %vm128 = vcmp.eq.f32.partialorder %v118, 0.0
    %v129 = vand.u32 %v118, 2147483648
    %v130 = vsel %vm128, %v129, %v127
    %v131 = vsub.f32 %v40, %v64
    %v132 = vsub.f32 %v42, %v66
    %v133 = vsub.f32 %v44, %v68
    %v134 = vmul.f32 %v131, %v131
    %v135 = vmul.f32 %v132, %v132
    %v136 = vadd.f32 %v134, %v135
    %v137 = vmul.f32 %v133, %v133
    %v138 = vadd.f32 %v136, %v137
    %v139 = vrsqrt.pop %v138
    %v140 = vmul.f32 %v139, %v138
    %v141 = vmul.f32 %v140, %v139
    %v142 = vmul.f32 0.5, %v141
    %v143 = vsub.f32 1.5, %v142
    %v144 = vmul.f32 %v139, %v143
    %v145 = vmul.f32 %v138, %v144
    %vm146 = vcmp.eq.f32.partialorder %v138, inf
    %v147 = vsel %vm146, %v138, %v145
    %vm148 = vcmp.eq.f32.partialorder %v138, 0.0
    %v149 = vand.u32 %v138, 2147483648
    %v150 = vsel %vm148, %v149, %v147
    %v151 = vsub.f32 %v130, %v150
    %v152 = vand.u32 2147483647, %v151
    %v153 = vsub.f32 %v46, %v58
    %v154 = vsub.f32 %v48, %v60
    %v155 = vsub.f32 %v50, %v62
    %v156 = vmul.f32 %v153, %v153
    %v157 = vmul.f32 %v154, %v154
    %v158 = vadd.f32 %v156, %v157
    %v159 = vmul.f32 %v155, %v155
    %v160 = vadd.f32 %v158, %v159
    %v161 = vrsqrt.pop %v160
    %v162 = vmul.f32 %v161, %v160
    %v163 = vmul.f32 %v162, %v161
    %v164 = vmul.f32 0.5, %v163
    %v165 = vsub.f32 1.5, %v164
    %v166 = vmul.f32 %v161, %v165
    %v167 = vmul.f32 %v160, %v166
    %vm168 = vcmp.eq.f32.partialorder %v160, inf
    %v169 = vsel %vm168, %v160, %v167
    %vm170 = vcmp.eq.f32.partialorder %v160, 0.0
    %v171 = vand.u32 %v160, 2147483648
    %v172 = vsel %vm170, %v171, %v169
    %v173 = vsub.f32 %v52, %v64
    %v174 = vsub.f32 %v54, %v66
    %v175 = vsub.f32 %v56, %v68
    %v176 = vmul.f32 %v173, %v173
    %v177 = vmul.f32 %v174, %v174
    %v178 = vadd.f32 %v176, %v177
    %v179 = vmul.f32 %v175, %v175
    %v180 = vadd.f32 %v178, %v179
    %v181 = vrsqrt.pop %v180
    %v182 = vmul.f32 %v181, %v180
    %v183 = vmul.f32 %v182, %v181
    %v184 = vmul.f32 0.5, %v183
    %v185 = vsub.f32 1.5, %v184
    %v186 = vmul.f32 %v181, %v185
    %v187 = vmul.f32 %v180, %v186
    %vm188 = vcmp.eq.f32.partialorder %v180, inf
    %v189 = vsel %vm188, %v180, %v187
    %vm190 = vcmp.eq.f32.partialorder %v180, 0.0
    %v191 = vand.u32 %v180, 2147483648
    %v192 = vsel %vm190, %v191, %v189
    %v193 = vsub.f32 %v172, %v192
    %v194 = vand.u32 2147483647, %v193
    %v195 = vadd.f32 %v110, %v152
    %v196 = vadd.f32 %v195, %v194
    %v197 = vld [vmem:[#allocation5] sm:$0xff]
    %v198 = vadd.f32 %v197, %v196
    %199 = vst [vmem:[#allocation5] sm:$0xff] %v198
    // Predicated region
    $region14: #{tpu_custom_call.1} parent=1 // pred_check
      _
    $region15: #{tpu_custom_call.1} parent=1 // pred_check_branch
      %201 = sbr.rel (0) target = $region17
    $region16: #{tpu_custom_call.1} parent=1 // pred_region
      %203 = vsyncadd [#allocation4], 0
      %s205 = sshll.u32 [#allocation5], 4
      %s206 = int_to_ptr.vmem [resolvable:$true] %s205
      %s207 = sshll.u32 %s1, 4
      %s208 = int_to_ptr.hbm [resolvable:$true] %s207
      %210 = dma.vmem_to_hbm [thread:$0]  %s206, 128, %s208, [#allocation4]
    $region17: #{tpu_custom_call.1} parent=1 // pred_fallthru
      _
    // Predicated region
    $region18: #{tpu_custom_call.1} parent=1 // pred_check
      _
    $region19: #{tpu_custom_call.1} parent=1 // pred_check_branch
      %212 = sbr.rel (0) target = $region21
    $region20: #{tpu_custom_call.1} parent=1 // pred_region
      %214 = dma.done [#allocation4], 128
    $region21: #{tpu_custom_call.1} parent=1 // pred_fallthru
      _
    %215 = vsyncpa [#allocation3], 1
    %216 = vsyncpa [#allocation4], 1

</llo_original>
